<compile_context>
chip_gen: v5e
topology: v5e:2x2
jax: 0.10.0
libtpu: 0.0.40
codegen_flags: <defaults>
</compile_context>

<pallas_src>
import jax
import jax.numpy as jnp
from jax import lax
from jax.experimental import pallas as pl
from jax.experimental.pallas import tpu as pltpu


def _linears_kernel(cond_ref, ws_ref, bs_ref, wh_ref, bh_ref, scale_ref, shift_ref):
    """Both FiLM linears for the whole batch in one call.

    cond_ref : (B, D)   conditioner
    ws_ref   : (C, D)   scale Linear weight (PyTorch out x in layout)
    bs_ref   : (1, C)   scale Linear bias
    wh_ref   : (C, D)   shift Linear weight
    bh_ref   : (1, C)   shift Linear bias
    scale_ref, shift_ref : (B, C) float32 outputs
    """
    cond = cond_ref[...]
    dims = (((1,), (1,)), ((), ()))  # contract D of (B, D) with D of (C, D) -> (B, C)
    scale_ref[...] = lax.dot_general(
        cond, ws_ref[...], dims, preferred_element_type=jnp.float32) + bs_ref[...]
    shift_ref[...] = lax.dot_general(
        cond, wh_ref[...], dims, preferred_element_type=jnp.float32) + bh_ref[...]


def _film_kernel(scale_ref, shift_ref, feat_ref, out_ref):
    """Pure streaming FMA: out = scale * feat + shift (per-row scale/shift,
    broadcast across the lane-dense spatial axis)."""
    feat = feat_ref[...]                          # (TR, TS)
    scale = scale_ref[...].astype(feat.dtype)     # (TR, 1)
    shift = shift_ref[...].astype(feat.dtype)     # (TR, 1)
    out_ref[...] = (scale * feat + shift).astype(out_ref.dtype)


def _round_up(x, m):
    return (x + m - 1) // m * m


def film_merge(feature, conditioner, w_scale, b_scale, w_shift, b_shift,
               *, max_rows_per_block=256, max_lanes_per_block=2048):
    """feature: (B, C, *spatial); conditioner: (B, D). Returns feature.shape."""
    B = feature.shape[0]
    C = feature.shape[1]
    D = conditioner.shape[1]

    # ---- Step 1: both linears for the whole batch (single grid step) -------
    scale, shift = pl.pallas_call(
        _linears_kernel,
        out_shape=(jax.ShapeDtypeStruct((B, C), jnp.float32),
                   jax.ShapeDtypeStruct((B, C), jnp.float32)),
        grid=(1,),
        in_specs=[
            pl.BlockSpec((B, D), lambda i: (0, 0)),
            pl.BlockSpec((C, D), lambda i: (0, 0)),
            pl.BlockSpec((1, C), lambda i: (0, 0)),
            pl.BlockSpec((C, D), lambda i: (0, 0)),
            pl.BlockSpec((1, C), lambda i: (0, 0)),
        ],
        out_specs=(pl.BlockSpec((B, C), lambda i: (0, 0)),
                   pl.BlockSpec((B, C), lambda i: (0, 0))),
    )(conditioner, w_scale, b_scale.reshape(1, C), w_shift, b_shift.reshape(1, C))

    # ---- Step 2: streaming FiLM FMA over (B*C, H*W) -------------------------
    S = 1
    for d in feature.shape[2:]:
        S *= d
    R = B * C

    feat2 = feature.reshape(R, S)
    scale_col = scale.reshape(R, 1)
    shift_col = shift.reshape(R, 1)

    itemsize = jnp.dtype(feature.dtype).itemsize
    sub = max(8, 32 // itemsize)                 # sublane multiple (f32:8, bf16:16)

    TR = _round_up(min(max_rows_per_block, _round_up(R, sub)), sub)
    TS = _round_up(min(max_lanes_per_block, _round_up(S, 128)), 128)
    Rp = _round_up(R, TR)
    Sp = _round_up(S, TS)

    if Rp != R or Sp != S:
        feat2 = jnp.pad(feat2, ((0, Rp - R), (0, Sp - S)))
        scale_col = jnp.pad(scale_col, ((0, Rp - R), (0, 0)))
        shift_col = jnp.pad(shift_col, ((0, Rp - R), (0, 0)))

    cost = pl.CostEstimate(
        flops=2 * R * S,
        transcendentals=0,
        bytes_accessed=2 * R * S * itemsize + 2 * R * 4,
    )

    out2 = pl.pallas_call(
        _film_kernel,
        out_shape=jax.ShapeDtypeStruct((Rp, Sp), feature.dtype),
        grid=(Rp // TR, Sp // TS),
        in_specs=[
            pl.BlockSpec((TR, 1), lambda r, s: (r, 0)),    # scale column per row tile
            pl.BlockSpec((TR, 1), lambda r, s: (r, 0)),    # shift column per row tile
            pl.BlockSpec((TR, TS), lambda r, s: (r, s)),   # feature tile
        ],
        out_specs=pl.BlockSpec((TR, TS), lambda r, s: (r, s)),
        compiler_params=pltpu.CompilerParams(
            dimension_semantics=("parallel", "parallel")),
        cost_estimate=cost,
    )(scale_col, shift_col, feat2)

    return out2[:R, :S].reshape(feature.shape)


def film_merge_ref(feature, conditioner, w_scale, b_scale, w_shift, b_shift):
    """Pure-JAX reference matching the PyTorch forward."""
    scale = conditioner @ w_scale.T + b_scale     # (B, C)
    shift = conditioner @ w_shift.T + b_shift     # (B, C)
    view = scale.shape + (1,) * (feature.ndim - scale.ndim)
    return scale.reshape(view) * feature + shift.reshape(view)


if __name__ == "__main__":
    # Shapes implied by the module: feature (B, C, H, W) NCHW, conditioner (B, D),
    # Linear layers D -> C.
    B, C, H, W, D = 2, 4, 16, 16, 8

    key = jax.random.PRNGKey(0)
    k_feat, k_cond, k_ws, k_bs, k_wh, k_bh = jax.random.split(key, 6)

    feature = jax.random.normal(k_feat, (B, C, H, W), dtype=jnp.float32)
    conditioner = jax.random.normal(k_cond, (B, D), dtype=jnp.float32)

    # Deterministic parameter init (nn.Linear-style uniform bound 1/sqrt(D)).
    bound = 1.0 / (D ** 0.5)
    w_scale = jax.random.uniform(k_ws, (C, D), jnp.float32, -bound, bound)
    b_scale = jax.random.uniform(k_bs, (C,), jnp.float32, -bound, bound)
    w_shift = jax.random.uniform(k_wh, (C, D), jnp.float32, -bound, bound)
    b_shift = jax.random.uniform(k_bh, (C,), jnp.float32, -bound, bound)

    out = film_merge(feature, conditioner, w_scale, b_scale, w_shift, b_shift)
    out = jax.block_until_ready(out)

    ref = film_merge_ref(feature, conditioner, w_scale, b_scale, w_shift, b_shift)
    assert out.shape == (B, C, H, W)
    assert jnp.allclose(out, ref, atol=1e-5, rtol=1e-5), "mismatch vs reference"

    print("KERNEL_OK")
</pallas_src>

<mosaic_0001>
module attributes {stable_mosaic.version = 11 : i64} {
  func.func @_linears_kernel(%arg0: i32, %arg1: memref<2x8xf32, #tpu.memory_space<vmem>>, %arg2: memref<4x8xf32, #tpu.memory_space<vmem>>, %arg3: memref<1x4xf32, #tpu.memory_space<vmem>>, %arg4: memref<4x8xf32, #tpu.memory_space<vmem>>, %arg5: memref<1x4xf32, #tpu.memory_space<vmem>>, %arg6: memref<2x4xf32, #tpu.memory_space<vmem>>, %arg7: memref<2x4xf32, #tpu.memory_space<vmem>>) attributes {dimension_semantics = [#tpu.dimension_semantics<arbitrary>], iteration_bounds = array<i64: 1>, scalar_prefetch = 0 : i64, scratch_operands = 0 : i64, tpu.core_type = #tpu.core_type<tc>, window_params = [{pipeline_mode = #tpu.pipeline_mode<synchronous>, transform_indices = @transform_0, window_bounds = array<i64: 2, 8>}, {pipeline_mode = #tpu.pipeline_mode<synchronous>, transform_indices = @transform_1, window_bounds = array<i64: 4, 8>}, {pipeline_mode = #tpu.pipeline_mode<synchronous>, transform_indices = @transform_2, window_bounds = array<i64: 1, 4>}, {pipeline_mode = #tpu.pipeline_mode<synchronous>, transform_indices = @transform_3, window_bounds = array<i64: 4, 8>}, {pipeline_mode = #tpu.pipeline_mode<synchronous>, transform_indices = @transform_4, window_bounds = array<i64: 1, 4>}, {pipeline_mode = #tpu.pipeline_mode<synchronous>, transform_indices = @transform_5, window_bounds = array<i64: 2, 4>}, {pipeline_mode = #tpu.pipeline_mode<synchronous>, transform_indices = @transform_6, window_bounds = array<i64: 2, 4>}]} {
    %c0 = arith.constant 0 : index
    %c0_0 = arith.constant 0 : index
    %0 = vector.load %arg1[%c0, %c0_0] : memref<2x8xf32, #tpu.memory_space<vmem>>, vector<2x8xf32>
    %c0_1 = arith.constant 0 : index
    %c0_2 = arith.constant 0 : index
    %1 = vector.load %arg2[%c0_1, %c0_2] : memref<4x8xf32, #tpu.memory_space<vmem>>, vector<4x8xf32>
    %cst = arith.constant dense<0.000000e+00> : vector<2x4xf32>
    %2 = tpu.matmul %0, %1, %cst {dimension_numbers = #tpu.dot_dimension_numbers<[1], [1], [0], [0], [0, 0, 1, 0], [], []>} : vector<2x8xf32>, vector<4x8xf32>, vector<2x4xf32> -> vector<2x4xf32>
    %c0_3 = arith.constant 0 : index
    %c0_4 = arith.constant 0 : index
    %3 = vector.load %arg3[%c0_3, %c0_4] : memref<1x4xf32, #tpu.memory_space<vmem>>, vector<1x4xf32>
    %4 = vector.broadcast %3 : vector<1x4xf32> to vector<2x4xf32>
    %5 = arith.addf %2, %4 : vector<2x4xf32>
    %c0_5 = arith.constant 0 : index
    %c0_6 = arith.constant 0 : index
    %6 = vector.load %arg6[%c0_5, %c0_6] : memref<2x4xf32, #tpu.memory_space<vmem>>, vector<2x4xf32>
    tpu.vector_store %arg6[%c0_5, %c0_6], %5 {strides = array<i32>} : memref<2x4xf32, #tpu.memory_space<vmem>>, vector<2x4xf32>,
    %c0_7 = arith.constant 0 : index
    %c0_8 = arith.constant 0 : index
    %7 = vector.load %arg4[%c0_7, %c0_8] : memref<4x8xf32, #tpu.memory_space<vmem>>, vector<4x8xf32>
    %cst_9 = arith.constant dense<0.000000e+00> : vector<2x4xf32>
    %8 = tpu.matmul %0, %7, %cst_9 {dimension_numbers = #tpu.dot_dimension_numbers<[1], [1], [0], [0], [0, 0, 1, 0], [], []>} : vector<2x8xf32>, vector<4x8xf32>, vector<2x4xf32> -> vector<2x4xf32>
    %c0_10 = arith.constant 0 : index
    %c0_11 = arith.constant 0 : index
    %9 = vector.load %arg5[%c0_10, %c0_11] : memref<1x4xf32, #tpu.memory_space<vmem>>, vector<1x4xf32>
    %10 = vector.broadcast %9 : vector<1x4xf32> to vector<2x4xf32>
    %11 = arith.addf %8, %10 : vector<2x4xf32>
    %c0_12 = arith.constant 0 : index
    %c0_13 = arith.constant 0 : index
    %12 = vector.load %arg7[%c0_12, %c0_13] : memref<2x4xf32, #tpu.memory_space<vmem>>, vector<2x4xf32>
    tpu.vector_store %arg7[%c0_12, %c0_13], %11 {strides = array<i32>} : memref<2x4xf32, #tpu.memory_space<vmem>>, vector<2x4xf32>,
    return
  }
  func.func @transform_0(%arg0: i32) -> (i32, i32) {
    %c0_i32 = arith.constant 0 : i32
    %c0_i32_0 = arith.constant 0 : i32
    %c0_i32_1 = arith.constant 0 : i32
    return %c0_i32, %c0_i32_0 : i32, i32
  }
  func.func @transform_1(%arg0: i32) -> (i32, i32) {
    %c0_i32 = arith.constant 0 : i32
    %c0_i32_0 = arith.constant 0 : i32
    %c0_i32_1 = arith.constant 0 : i32
    return %c0_i32, %c0_i32_0 : i32, i32
  }
  func.func @transform_2(%arg0: i32) -> (i32, i32) {
    %c0_i32 = arith.constant 0 : i32
    %c0_i32_0 = arith.constant 0 : i32
    %c0_i32_1 = arith.constant 0 : i32
    return %c0_i32, %c0_i32_0 : i32, i32
  }
  func.func @transform_3(%arg0: i32) -> (i32, i32) {
    %c0_i32 = arith.constant 0 : i32
    %c0_i32_0 = arith.constant 0 : i32
    %c0_i32_1 = arith.constant 0 : i32
    return %c0_i32, %c0_i32_0 : i32, i32
  }
  func.func @transform_4(%arg0: i32) -> (i32, i32) {
    %c0_i32 = arith.constant 0 : i32
    %c0_i32_0 = arith.constant 0 : i32
    %c0_i32_1 = arith.constant 0 : i32
    return %c0_i32, %c0_i32_0 : i32, i32
  }
  func.func @transform_5(%arg0: i32) -> (i32, i32) {
    %c0_i32 = arith.constant 0 : i32
    %c0_i32_0 = arith.constant 0 : i32
    %c0_i32_1 = arith.constant 0 : i32
    return %c0_i32, %c0_i32_0 : i32, i32
  }
  func.func @transform_6(%arg0: i32) -> (i32, i32) {
    %c0_i32 = arith.constant 0 : i32
    %c0_i32_0 = arith.constant 0 : i32
    %c0_i32_1 = arith.constant 0 : i32
    return %c0_i32, %c0_i32_0 : i32, i32
  }
}

</mosaic_0001>

<llo_original>
// kernel: tpu_custom_call.1
$region0: #{tpu_custom_call.1}
  #allocation0 [shape = 'u32[]', space=smem, size = 0x4, offset = 0x4, fixed_abs, tag = 'smem constant byte address 0x4 - core index']
  #allocation1 [shape = 'u32[72,128]{1,0:T(1,128)}', space=vmem, size = 0x9000, scoped, tag = 'internal scratch']
  %s0 = inlined_call_operand.hbm [shape: f32[2,8], index: 0, kind: input, shape index: {}]
  %s1 = inlined_call_operand.hbm [shape: f32[4,8], index: 1, kind: input, shape index: {}]
  %s2 = inlined_call_operand.vmem [shape: f32[1,4], index: 2, kind: input, shape index: {}]
  %s3 = inlined_call_operand.hbm [shape: f32[4,8], index: 3, kind: input, shape index: {}]
  %s4 = inlined_call_operand.vmem [shape: f32[1,4], index: 4, kind: input, shape index: {}]
  %s5 = inlined_call_operand.hbm [shape: f32[2,4], index: 5, kind: output, shape index: {0}]
  %s6 = inlined_call_operand.hbm [shape: f32[2,4], index: 6, kind: output, shape index: {1}]
  %7 = xla_tuple %s5, %s6
  %s8 = sld [smem:[#allocation0]]
  $region50: #{tpu_custom_call.1} parent=0
    _
  %s10 = ssub.s32 1, %s8
  %s11 = scalar_select 0, %s10, %s8
  $region1: #{tpu_custom_call.1} parent=0
    #allocation2 [shape = 'u8[1024]{0}', space=vmem, size = 0x400, scoped, tag = 'input window, operand 0, single buffered']
    #allocation3 [shape = 's32[1]{0}', space=sflag, size = 0x4, scoped, tag = 'scoped memory for tpu_custom_call.1']
    #allocation4 [shape = 's32[1]{0}', space=sflag, size = 0x4, scoped, tag = 'scoped memory for tpu_custom_call.1']
    #allocation5 [shape = 'u8[2048]{0}', space=vmem, size = 0x800, scoped, tag = 'input window, operand 1, single buffered']
    #allocation6 [shape = 's32[1]{0}', space=sflag, size = 0x4, scoped, tag = 'scoped memory for tpu_custom_call.1']
    #allocation7 [shape = 'u8[2048]{0}', space=vmem, size = 0x800, scoped, tag = 'input window, operand 3, single buffered']
    #allocation8 [shape = 'u8[1024]{0}', space=vmem, size = 0x400, scoped, tag = 'output window, operand 0, single buffered']
    #allocation9 [shape = 'u8[1024]{0}', space=vmem, size = 0x400, scoped, tag = 'output window, operand 1, single buffered']
    #allocation10 [shape = 's32[1]{0}', space=sflag, size = 0x4, scoped, tag = 'scoped memory for tpu_custom_call.1']
    %12 = vsyncpa [#allocation3], 0
    %13 = vsyncpa [#allocation6], 0
    %14 = vsyncpa [#allocation4], 0
    %15 = vsyncpa [#allocation10], 0
    // Predicated region
    $region2: #{tpu_custom_call.1} parent=1 // pred_check
      _
    $region3: #{tpu_custom_call.1} parent=1 // pred_check_branch
      %17 = sbr.rel (0) target = $region5
    $region4: #{tpu_custom_call.1} parent=1 // pred_region
      %19 = vsyncadd [#allocation3], 0
      %s21 = sshll.u32 %s0, 4
      %s22 = int_to_ptr.hbm [resolvable:$true] %s21
      %s23 = sshll.u32 [#allocation2], 4
      %s24 = int_to_ptr.vmem [resolvable:$true] %s23
      %26 = dma.hbm_to_vmem [thread:$0]  %s22, 32, %s24, [#allocation3]
    $region5: #{tpu_custom_call.1} parent=1 // pred_fallthru
      _
    // Predicated region
    $region6: #{tpu_custom_call.1} parent=1 // pred_check
      _
    $region7: #{tpu_custom_call.1} parent=1 // pred_check_branch
      %28 = sbr.rel (0) target = $region9
    $region8: #{tpu_custom_call.1} parent=1 // pred_region
      %30 = vsyncadd [#allocation6], 0
      %s32 = sshll.u32 %s1, 4
      %s33 = int_to_ptr.hbm [resolvable:$true] %s32
      %s34 = sshll.u32 [#allocation5], 4
      %s35 = int_to_ptr.vmem [resolvable:$true] %s34
      %37 = dma.hbm_to_vmem [thread:$0]  %s33, 64, %s35, [#allocation6]
    $region9: #{tpu_custom_call.1} parent=1 // pred_fallthru
      _
    // Predicated region
    $region10: #{tpu_custom_call.1} parent=1 // pred_check
      _
    $region11: #{tpu_custom_call.1} parent=1 // pred_check_branch
      %39 = sbr.rel (0) target = $region13
    $region12: #{tpu_custom_call.1} parent=1 // pred_region
      _
    $region13: #{tpu_custom_call.1} parent=1 // pred_fallthru
      _
    // Predicated region
    $region14: #{tpu_custom_call.1} parent=1 // pred_check
      _
    $region15: #{tpu_custom_call.1} parent=1 // pred_check_branch
      %41 = sbr.rel (0) target = $region17
    $region16: #{tpu_custom_call.1} parent=1 // pred_region
      %43 = vsyncadd [#allocation6], 0
      %s45 = sshll.u32 %s3, 4
      %s46 = int_to_ptr.hbm [resolvable:$true] %s45
      %s47 = sshll.u32 [#allocation7], 4
      %s48 = int_to_ptr.vmem [resolvable:$true] %s47
      %50 = dma.hbm_to_vmem [thread:$0]  %s46, 64, %s48, [#allocation6]
    $region17: #{tpu_custom_call.1} parent=1 // pred_fallthru
      _
    // Predicated region
    $region18: #{tpu_custom_call.1} parent=1 // pred_check
      _
    $region19: #{tpu_custom_call.1} parent=1 // pred_check_branch
      %52 = sbr.rel (0) target = $region21
    $region20: #{tpu_custom_call.1} parent=1 // pred_region
      _
    $region21: #{tpu_custom_call.1} parent=1 // pred_fallthru
      _
    // Predicated region
    $region22: #{tpu_custom_call.1} parent=1 // pred_check
      _
    $region23: #{tpu_custom_call.1} parent=1 // pred_check_branch
      %54 = sbr.rel (0) target = $region25
    $region24: #{tpu_custom_call.1} parent=1 // pred_region
      %56 = dma.done [#allocation3], 32
    $region25: #{tpu_custom_call.1} parent=1 // pred_fallthru
      _
    // Predicated region
    $region26: #{tpu_custom_call.1} parent=1 // pred_check
      _
    $region27: #{tpu_custom_call.1} parent=1 // pred_check_branch
      %58 = sbr.rel (0) target = $region29
    $region28: #{tpu_custom_call.1} parent=1 // pred_region
      %60 = dma.done [#allocation6], 64
    $region29: #{tpu_custom_call.1} parent=1 // pred_fallthru
      _
    // Predicated region
    $region30: #{tpu_custom_call.1} parent=1 // pred_check
      _
    $region31: #{tpu_custom_call.1} parent=1 // pred_check_branch
      %62 = sbr.rel (0) target = $region33
    $region32: #{tpu_custom_call.1} parent=1 // pred_region
      %64 = dma.done [#allocation6], 64
    $region33: #{tpu_custom_call.1} parent=1 // pred_fallthru
      _
    %v65 = vld [vmem:[#allocation2] sm:$0x3]
    %v66 = vld [vmem:[#allocation5] sm:$0xf]
    %v67 = vld [vmem:[%s2] sm:$0x1]
    %v69 = vperm.slane %v67, 0
    %vm71 = vcmask 64512
    %v73 = vsel %vm71, %v65, 0
    %v76 = vsel %vm71, %v66, 0
    %78 = vmatpush.xpose.msra.mxu0 0.0
    %79 = vmatpush.xpose.msra.mxu0 0.0
    %80 = vmatpush.xpose.msra.mxu0 0.0
    %81 = vmatpush.xpose.msra.mxu0 0.0
    %82 = vmatpush.xpose.msra.mxu0 0.0
    %83 = vmatpush.xpose.msra.mxu0 0.0
    %84 = vmatpush.xpose.msra.mxu0 0.0
    %85 = vmatpush.xpose.msra.mxu0 0.0
    %86 = vmatpush.xpose.msra.mxu0 0.0
    %87 = vmatpush.xpose.msra.mxu0 0.0
    %88 = vmatpush.xpose.msra.mxu0 0.0
    %89 = vmatpush.xpose.msra.mxu0 0.0
    %90 = vmatpush.xpose.msra.mxu0 0.0
    %91 = vmatpush.xpose.msra.mxu0 0.0
    %92 = vmatpush.xpose.msra.mxu0 0.0
    %93 = vmatpush.xpose.msra.mxu0 %v76
    %94 = vmatmul.f32.gmra.mxu0 %v73
    %v95 = vpop.f32.mrf.mxu0
    %v96 = vadd.f32 %v69, %v95
    %97 = vdwg.mxu0
    %vm98 = vcmask 25600
    %99 = vst.msk [vmem:[#allocation8] sm:$0x3] %vm98, %v96
    %v100 = vld [vmem:[#allocation7] sm:$0xf]
    %v101 = vld [vmem:[%s4] sm:$0x1]
    %v103 = vperm.slane %v101, 0
    %v106 = vsel %vm71, %v100, 0
    %108 = vmatpush.xpose.msra.mxu0 0.0
    %109 = vmatpush.xpose.msra.mxu0 0.0
    %110 = vmatpush.xpose.msra.mxu0 0.0
    %111 = vmatpush.xpose.msra.mxu0 0.0
    %112 = vmatpush.xpose.msra.mxu0 0.0
    %113 = vmatpush.xpose.msra.mxu0 0.0
    %114 = vmatpush.xpose.msra.mxu0 0.0
    %115 = vmatpush.xpose.msra.mxu0 0.0
    %116 = vmatpush.xpose.msra.mxu0 0.0
    %117 = vmatpush.xpose.msra.mxu0 0.0
    %118 = vmatpush.xpose.msra.mxu0 0.0
    %119 = vmatpush.xpose.msra.mxu0 0.0
    %120 = vmatpush.xpose.msra.mxu0 0.0
    %121 = vmatpush.xpose.msra.mxu0 0.0
    %122 = vmatpush.xpose.msra.mxu0 0.0
    %123 = vmatpush.xpose.msra.mxu0 %v106
    %124 = vmatmul.f32.gmra.mxu0 %v73
    %v125 = vpop.f32.mrf.mxu0
    %v126 = vadd.f32 %v103, %v125
    %127 = vdwg.mxu0
    %128 = vst.msk [vmem:[#allocation9] sm:$0x3] %vm98, %v126
    // Predicated region
    $region34: #{tpu_custom_call.1} parent=1 // pred_check
      _
    $region35: #{tpu_custom_call.1} parent=1 // pred_check_branch
      %130 = sbr.rel (0) target = $region37
    $region36: #{tpu_custom_call.1} parent=1 // pred_region
      %132 = vsyncadd [#allocation4], 0
      %s134 = sshll.u32 [#allocation8], 4
      %s135 = int_to_ptr.vmem [resolvable:$true] %s134
      %s136 = sshll.u32 %s5, 4
      %s137 = int_to_ptr.hbm [resolvable:$true] %s136
      %139 = dma.vmem_to_hbm [thread:$0]  %s135, 32, %s137, [#allocation4]
    $region37: #{tpu_custom_call.1} parent=1 // pred_fallthru
      _
    // Predicated region
    $region38: #{tpu_custom_call.1} parent=1 // pred_check
      _
    $region39: #{tpu_custom_call.1} parent=1 // pred_check_branch
      %141 = sbr.rel (0) target = $region41
    $region40: #{tpu_custom_call.1} parent=1 // pred_region
      %143 = vsyncadd [#allocation10], 0
      %s145 = sshll.u32 [#allocation9], 4
      %s146 = int_to_ptr.vmem [resolvable:$true] %s145
      %s147 = sshll.u32 %s6, 4
      %s148 = int_to_ptr.hbm [resolvable:$true] %s147
      %150 = dma.vmem_to_hbm [thread:$0]  %s146, 32, %s148, [#allocation10]
    $region41: #{tpu_custom_call.1} parent=1 // pred_fallthru
      _
    // Predicated region
    $region42: #{tpu_custom_call.1} parent=1 // pred_check
      _
    $region43: #{tpu_custom_call.1} parent=1 // pred_check_branch
      %152 = sbr.rel (0) target = $region45
    $region44: #{tpu_custom_call.1} parent=1 // pred_region
      %154 = dma.done [#allocation4], 32
    $region45: #{tpu_custom_call.1} parent=1 // pred_fallthru
      _
    // Predicated region
    $region46: #{tpu_custom_call.1} parent=1 // pred_check
      _
    $region47: #{tpu_custom_call.1} parent=1 // pred_check_branch
      %156 = sbr.rel (0) target = $region49
    $region48: #{tpu_custom_call.1} parent=1 // pred_region
      %158 = dma.done [#allocation10], 32
    $region49: #{tpu_custom_call.1} parent=1 // pred_fallthru
      _
    %159 = vsyncpa [#allocation3], 1
    %160 = vsyncpa [#allocation6], 1
    %161 = vsyncpa [#allocation4], 1
    %162 = vsyncpa [#allocation10], 1

</llo_original>
